<compile_context>
chip_gen: v6e
topology: v6e:2x2x1
jax: 0.10.0
libtpu: 0.0.40
codegen_flags: <defaults>
</compile_context>

<pallas_src>
import jax
import jax.numpy as jnp
from jax.experimental import pallas as pl
from jax.experimental.pallas import tpu as pltpu


def _round_up(n, m):
    return ((n + m - 1) // m) * m


def _vmem_capacity_bytes():
    """Generation-aware VMEM capacity; conservative fallback (v7x per-TC)."""
    try:
        return int(pltpu.get_tpu_info().vmem_capacity_bytes)
    except Exception:
        return 64 << 20


def secondnet_kernel(x_ref, w_ref, b_ref, o_ref):
    # x_ref: [TB, H] (VMEM, streamed), w_ref: [1, H] (VMEM, resident),
    # b_ref: [1] (SMEM scalar), o_ref: [1, TB] (VMEM, lane-dense).
    x = x_ref[...]                                # [TB, H]
    w = w_ref[...]                                # [1, H] -> broadcast over rows
    b = b_ref[0]                                  # scalar read from SMEM
    y = jnp.sum(x * w, axis=-1) + b               # VPU mul + XLU lane-reduce -> [TB]
    o_ref[...] = jax.nn.sigmoid(y)[None, :].astype(o_ref.dtype)


def _choose_tile(B, H, vmem_cap):
    """Pick the batch tile TB from the padded-VMEM budget of this generation.

    Small/medium B -> a single block equal to the full array (no alignment
    constraints).  Large B -> a multiple of 128, sized so the double-buffered
    x stream uses roughly a quarter of VMEM (v7x: ~16 MiB, v5e/v6e: ~32 MiB)
    while keeping ~16 grid steps for megacore sharding / DMA overlap.
    """
    lane_bytes = _round_up(H, 128) * 4                      # padded VMEM bytes / row
    x_budget = min(max(vmem_cap // 4, 8 << 20), 48 << 20)   # x double-buffer budget
    rows_vmem = max(128, ((x_budget // 2) // lane_bytes) // 128 * 128)
    if B <= rows_vmem:
        return B                                            # single full-array block
    rows_steps = _round_up(pl.cdiv(B, 16), 128)             # keep ~16 grid steps
    return min(rows_vmem, max(1024, rows_steps))


def second_net_forward(x, w, b, tile_rows=None):
    """x: [B, H] f32, w: [1, H] f32 (PyTorch nn.Linear layout), b: [1] f32 -> [B, 1]."""
    B, H = x.shape
    vmem_cap = _vmem_capacity_bytes()
    if tile_rows is None:
        tb = _choose_tile(B, H, vmem_cap)
    else:
        tb = B if tile_rows >= B else max(128, _round_up(int(tile_rows), 128))
    grid = (pl.cdiv(B, tb),)

    # VMEM accounting with padded shapes (lane padding to 128, sublanes to 8).
    h_pad = _round_up(H, 128)
    vmem_need = (2 * _round_up(tb, 8) * h_pad * 4            # double-buffered x tiles
                 + 2 * 8 * h_pad * 4                         # resident weight tile
                 + 2 * 8 * _round_up(tb, 128) * 4)           # (1, tb) output slabs
    vmem_limit = int(min(vmem_cap, max(vmem_need + (2 << 20), 16 << 20)))

    out = pl.pallas_call(
        secondnet_kernel,
        out_shape=jax.ShapeDtypeStruct((1, B), x.dtype),
        grid=grid,
        in_specs=[
            pl.BlockSpec((tb, H), lambda i: (i, 0)),            # streamed x tiles
            pl.BlockSpec((1, H), lambda i: (0, 0)),             # weight stays resident
            pl.BlockSpec(memory_space=pltpu.MemorySpace.SMEM),  # bias as SMEM scalar
        ],
        out_specs=pl.BlockSpec((1, tb), lambda i: (0, i)),      # lane-dense output slab
        compiler_params=pltpu.CompilerParams(
            dimension_semantics=("parallel",),
            vmem_limit_bytes=vmem_limit,
        ),
        cost_estimate=pl.CostEstimate(
            flops=2 * B * H,
            transcendentals=B,
            bytes_accessed=B * H * 4 + H * 4 + 4 + B * 4,
        ),
    )(x, w, b)

    return out.reshape(B, 1)


if __name__ == "__main__":
    key = jax.random.PRNGKey(0)
    kx, kw, kb, kx2, kx3 = jax.random.split(key, 5)

    # Small shapes consistent with the module: batch=2, hidden_dim=32.
    B, H = 2, 32
    x = jax.random.normal(kx, (B, H), dtype=jnp.float32)

    # nn.Linear(hidden_dim, 1) default init: U(-1/sqrt(H), 1/sqrt(H)).
    bound = 1.0 / jnp.sqrt(jnp.float32(H))
    w = jax.random.uniform(kw, (1, H), dtype=jnp.float32, minval=-bound, maxval=bound)
    b = jax.random.uniform(kb, (1,), dtype=jnp.float32, minval=-bound, maxval=bound)

    out = jax.block_until_ready(second_net_forward(x, w, b))
    ref = jax.nn.sigmoid(jnp.sum(x * w, axis=-1, keepdims=True) + b)
    assert out.shape == (B, 1)
    assert jnp.allclose(out, ref, atol=1e-6, rtol=1e-6)

    # Auto-tiled path with a batch that is not a multiple of 8 / 128.
    B2 = 2053
    x2 = jax.random.normal(kx2, (B2, H), dtype=jnp.float32)
    out2 = jax.block_until_ready(second_net_forward(x2, w, b))
    ref2 = jax.nn.sigmoid(jnp.sum(x2 * w, axis=-1, keepdims=True) + b)
    assert out2.shape == (B2, 1)
    assert jnp.allclose(out2, ref2, atol=1e-6, rtol=1e-6)

    # Forced multi-tile path: exercises the batch grid, the ragged final block
    # (masked edge writes) and the lane-dense output slabs.
    B3 = 1000
    x3 = jax.random.normal(kx3, (B3, H), dtype=jnp.float32)
    out3 = jax.block_until_ready(second_net_forward(x3, w, b, tile_rows=256))
    ref3 = jax.nn.sigmoid(jnp.sum(x3 * w, axis=-1, keepdims=True) + b)
    assert out3.shape == (B3, 1)
    assert jnp.allclose(out3, ref3, atol=1e-6, rtol=1e-6)

    print("KERNEL_OK")
</pallas_src>

<mosaic_0001>
module attributes {stable_mosaic.version = 11 : i64} {
  func.func @secondnet_kernel(%arg0: i32, %arg1: memref<2x32xf32, #tpu.memory_space<vmem>>, %arg2: memref<1x32xf32, #tpu.memory_space<vmem>>, %arg3: memref<1xf32, #tpu.memory_space<smem>>, %arg4: memref<1x2xf32, #tpu.memory_space<vmem>>) attributes {dimension_semantics = [#tpu.dimension_semantics<parallel>], iteration_bounds = array<i64: 1>, scalar_prefetch = 0 : i64, scratch_operands = 0 : i64, tpu.core_type = #tpu.core_type<tc>, window_params = [{transform_indices = @transform_0, window_bounds = array<i64: 2, 32>}, {pipeline_mode = #tpu.pipeline_mode<synchronous>, transform_indices = @transform_1, window_bounds = array<i64: 1, 32>}, {transform_indices = @transform_2, window_bounds = array<i64: 1>}, {transform_indices = @transform_3, window_bounds = array<i64: 1, 2>}]} {
    %c0 = arith.constant 0 : index
    %c0_0 = arith.constant 0 : index
    %0 = vector.load %arg1[%c0, %c0_0] : memref<2x32xf32, #tpu.memory_space<vmem>>, vector<2x32xf32>
    %c0_1 = arith.constant 0 : index
    %c0_2 = arith.constant 0 : index
    %1 = vector.load %arg2[%c0_1, %c0_2] : memref<1x32xf32, #tpu.memory_space<vmem>>, vector<1x32xf32>
    %c0_3 = arith.constant 0 : index
    %2 = memref.load %arg3[%c0_3] : memref<1xf32, #tpu.memory_space<smem>>
    %3 = vector.broadcast %1 : vector<1x32xf32> to vector<2x32xf32>
    %4 = arith.mulf %0, %3 : vector<2x32xf32>
    %cst = arith.constant dense<0.000000e+00> : vector<2xf32>
    %5 = vector.multi_reduction <add>, %4, %cst [1] : vector<2x32xf32> to vector<2xf32>
    %6 = vector.broadcast %2 : f32 to vector<2xf32>
    %7 = arith.addf %5, %6 : vector<2xf32>
    %8 = arith.negf %7 : vector<2xf32>
    %9 = math.exp %8 : vector<2xf32>
    %cst_4 = arith.constant 1.000000e+00 : f32
    %10 = vector.broadcast %cst_4 : f32 to vector<2xf32>
    %11 = arith.addf %10, %9 : vector<2xf32>
    %12 = arith.divf %10, %11 : vector<2xf32>
    %13 = vector.shape_cast %12 : vector<2xf32> to vector<1x2xf32>
    %c0_5 = arith.constant 0 : index
    %c0_6 = arith.constant 0 : index
    %14 = vector.load %arg4[%c0_5, %c0_6] : memref<1x2xf32, #tpu.memory_space<vmem>>, vector<1x2xf32>
    tpu.vector_store %arg4[%c0_5, %c0_6], %13 {strides = array<i32>} : memref<1x2xf32, #tpu.memory_space<vmem>>, vector<1x2xf32>,
    return
  }
  func.func @transform_0(%arg0: i32) -> (i32, i32) {
    %c0_i32 = arith.constant 0 : i32
    %c0_i32_0 = arith.constant 0 : i32
    return %arg0, %c0_i32 : i32, i32
  }
  func.func @transform_1(%arg0: i32) -> (i32, i32) {
    %c0_i32 = arith.constant 0 : i32
    %c0_i32_0 = arith.constant 0 : i32
    %c0_i32_1 = arith.constant 0 : i32
    return %c0_i32, %c0_i32_0 : i32, i32
  }
  func.func @transform_2(%arg0: i32) -> i32 {
    %c0_i32 = arith.constant 0 : i32
    %c0_i32_0 = arith.constant 0 : i32
    return %c0_i32 : i32
  }
  func.func @transform_3(%arg0: i32) -> (i32, i32) {
    %c0_i32 = arith.constant 0 : i32
    %c0_i32_0 = arith.constant 0 : i32
    return %c0_i32, %arg0 : i32, i32
  }
}

</mosaic_0001>

<llo_original>
// kernel: tpu_custom_call.1
$region0: #{tpu_custom_call.1}
  #allocation0 [shape = 'u32[]', space=smem, size = 0x4, offset = 0x4, fixed_abs, tag = 'smem constant byte address 0x4 - core index']
  #allocation1 [shape = 'u32[144,128]{1,0:T(1,128)}', space=vmem, size = 0x12000, scoped, tag = 'internal scratch']
  #allocation2 [shape = 'f32[1]{0:T(128)S(6)}', space=smem, size = 0x200, scoped, tag = 'scoped memory for tpu_custom_call.1']
  %s0 = inlined_call_operand.vmem [shape: f32[2,32], index: 0, kind: input, shape index: {}]
  %s1 = inlined_call_operand.vmem [shape: f32[1,32], index: 1, kind: input, shape index: {}]
  %s2 = inlined_call_operand.<no memory space> [shape: f32[1], index: 2, kind: input, shape index: {}]
  %s3 = inlined_call_operand.hbm [shape: f32[1,2], index: 3, kind: output, shape index: {}]
  %s4 = sld [smem:[#allocation0]]
  $region22: #{tpu_custom_call.1} parent=0
    _
  %s6 = ssub.s32 1, %s4
  %s7 = scalar_select 0, %s6, %s4
  %8 = sst [smem:[#allocation2]] %s2
  $region1: #{tpu_custom_call.1} parent=0
    #allocation3 [shape = 'u8[512]{0}', space=vmem, size = 0x400, scoped, tag = 'output window, operand 0, single buffered']
    #allocation4 [shape = 's32[1]{0}', space=sflag, size = 0x4, scoped, tag = 'scoped memory for tpu_custom_call.1']
    %9 = vsyncpa [#allocation4], 0
    // Predicated region
    $region2: #{tpu_custom_call.1} parent=1 // pred_check
      _
    $region3: #{tpu_custom_call.1} parent=1 // pred_check_branch
      %11 = sbr.rel (0) target = $region5
    $region4: #{tpu_custom_call.1} parent=1 // pred_region
      _
    $region5: #{tpu_custom_call.1} parent=1 // pred_fallthru
      _
    // Predicated region
    $region6: #{tpu_custom_call.1} parent=1 // pred_check
      _
    $region7: #{tpu_custom_call.1} parent=1 // pred_check_branch
      %13 = sbr.rel (0) target = $region9
    $region8: #{tpu_custom_call.1} parent=1 // pred_region
      _
    $region9: #{tpu_custom_call.1} parent=1 // pred_fallthru
      _
    // Predicated region
    $region10: #{tpu_custom_call.1} parent=1 // pred_check
      _
    $region11: #{tpu_custom_call.1} parent=1 // pred_check_branch
      %15 = sbr.rel (0) target = $region13
    $region12: #{tpu_custom_call.1} parent=1 // pred_region
      _
    $region13: #{tpu_custom_call.1} parent=1 // pred_fallthru
      _
    %v16 = vld [vmem:[%s0] sm:$0x3]
    %v17 = vld [vmem:[%s1] sm:$0x1]
    %s18 = sld [smem:[#allocation2]]
    %v20 = vlaneseq
    %v21 = vshrl.u32 %v20, 7
    %v22 = vsub.s32 0, %v21
    %v23 = vrot.slane %v17, %v22
    %v25 = vmul.f32 %v16, %v23
    %vm26 = vcmask 254976
    %v27 = vsel %vm26, %v25, 0.0
    %28 = vadd.xlane.f32.xlu0 %v27
    %v29 = vpop.xlane.xlu0 %28
    %v30 = vstv %s18
    %v31 = vadd.f32 %v29, %v30
    %v32 = vxor.u32 %v31, 2147483648
    %v33 = vmul.f32 %v32, 1.442695
    %v34 = vpow.pop %v33
    %v35 = vadd.f32 %v34, 1.0
    %v36 = vrcp.pop %v35
    %v37 = vmul.f32 1.0, %v36
    %v39 = vlaneseq
    %v40 = vand.u32 %v39, 127
    %v41 = vlaneseq
    %v42 = vshrl.u32 %v41, 7
    %v43 = vsub.s32 %v40, %v42
    %v44 = vrot.slane %v37, %v43
    %vm46 = vcmask 8192
    %47 = vst.msk [vmem:[#allocation3] sm:$0x1] %vm46, %v44
    // Predicated region
    $region14: #{tpu_custom_call.1} parent=1 // pred_check
      _
    $region15: #{tpu_custom_call.1} parent=1 // pred_check_branch
      %49 = sbr.rel (0) target = $region17
    $region16: #{tpu_custom_call.1} parent=1 // pred_region
      %s51 = ssub.s32 16, 16
      %52 = vsyncadd [#allocation4], %s51
      %s54 = sshll.u32 [#allocation3], 4
      %s55 = int_to_ptr.vmem [resolvable:$true] %s54
      %57 = dma.vmem_to_hbm [thread:$0]  %s55, 16, %s3, [#allocation4]
    $region17: #{tpu_custom_call.1} parent=1 // pred_fallthru
      _
    // Predicated region
    $region18: #{tpu_custom_call.1} parent=1 // pred_check
      _
    $region19: #{tpu_custom_call.1} parent=1 // pred_check_branch
      %59 = sbr.rel (0) target = $region21
    $region20: #{tpu_custom_call.1} parent=1 // pred_region
      %60 = dma.done [#allocation4], 16
    $region21: #{tpu_custom_call.1} parent=1 // pred_fallthru
      _
    %61 = vsyncpa [#allocation4], 1

</llo_original>
